<compile_context>
chip_gen: v5e
topology: v5e:2x2
jax: 0.10.0
libtpu: 0.0.40
codegen_flags: <defaults>
</compile_context>

<pallas_src>
import jax
import jax.numpy as jnp
from jax.experimental import pallas as pl
from jax.experimental.pallas import tpu as pltpu


def _round_up(x, m):
    return (x + m - 1) // m * m


def _critic_kernel(s_ref, a_ref,
                   w1s_ref, w1a_ref, b1_ref,
                   w2_ref, b2_ref,
                   w3_ref, b3_ref,
                   w4_ref, b4_ref,
                   o_ref):
    s = s_ref[...]                       # (TB, state_dim)
    a = a_ref[...]                       # (TB, action_dim)

    # Layer 1: fused concat -> split matmul.
    h = (jnp.dot(s, w1s_ref[...], preferred_element_type=jnp.float32)
         + jnp.dot(a, w1a_ref[...], preferred_element_type=jnp.float32)
         + b1_ref[...])
    h = jnp.maximum(h, 0.0)

    # Layer 2
    h = jnp.dot(h, w2_ref[...], preferred_element_type=jnp.float32) + b2_ref[...]
    h = jnp.maximum(h, 0.0)

    # Layer 3
    h = jnp.dot(h, w3_ref[...], preferred_element_type=jnp.float32) + b3_ref[...]
    h = jnp.maximum(h, 0.0)

    # Layer 4 (N=1): VPU multiply + lane reduction instead of a 1-column MXU matmul.
    q = jnp.sum(h * w4_ref[...], axis=-1, keepdims=True) + b4_ref[...]
    o_ref[...] = q.astype(o_ref.dtype)
    # TODO(synk): if the masked (TB,1) store ever dominates (wall - compute),
    # stage q into a (TB,128) scratch and DMA only column 0.


def critic_forward(state, action, params, *, block_batch=1024):
    """state: (B, state_dim), action: (B, action_dim) -> q: (B, 1)"""
    (w1, b1), (w2, b2), (w3, b3), (w4, b4) = params
    batch, state_dim = state.shape
    action_dim = action.shape[1]
    mid = w1.shape[1]

    # --- zero-pad hidden width to a lane-dense multiple of 128 (exact) ---
    mid_p = _round_up(mid, 128)
    pad_c = mid_p - mid
    w1p = jnp.pad(w1, ((0, 0), (0, pad_c)))
    b1p = jnp.pad(b1, ((0, 0), (0, pad_c)))
    w2p = jnp.pad(w2, ((0, pad_c), (0, pad_c)))
    b2p = jnp.pad(b2, ((0, 0), (0, pad_c)))
    w3p = jnp.pad(w3, ((0, pad_c), (0, pad_c)))
    b3p = jnp.pad(b3, ((0, 0), (0, pad_c)))
    w4p = jnp.pad(w4, ((0, pad_c), (0, 0))).reshape(1, mid_p)  # row vec for VPU reduce

    # --- fused concat: split W1 rows into state / action contributions ---
    w1s = w1p[:state_dim]
    w1a = w1p[state_dim:]

    # --- batch tiling ---
    tb = min(block_batch, _round_up(batch, 8))
    bp = _round_up(batch, tb)
    if bp != batch:
        state = jnp.pad(state, ((0, bp - batch), (0, 0)))
        action = jnp.pad(action, ((0, bp - batch), (0, 0)))

    # Weights/biases: constant index_map -> resident in VMEM across grid steps.
    resident = lambda arr: pl.BlockSpec(arr.shape, lambda i: (0, 0))

    q = pl.pallas_call(
        _critic_kernel,
        out_shape=jax.ShapeDtypeStruct((bp, 1), jnp.float32),
        grid=(bp // tb,),
        in_specs=[
            pl.BlockSpec((tb, state_dim), lambda i: (i, 0)),
            pl.BlockSpec((tb, action_dim), lambda i: (i, 0)),
            resident(w1s), resident(w1a), resident(b1p),
            resident(w2p), resident(b2p),
            resident(w3p), resident(b3p),
            resident(w4p), resident(b4),
        ],
        out_specs=pl.BlockSpec((tb, 1), lambda i: (i, 0)),
        compiler_params=pltpu.CompilerParams(
            dimension_semantics=("parallel",)),
    )(state, action, w1s, w1a, b1p, w2p, b2p, w3p, b3p, w4p, b4)

    return q[:batch]


def init_critic_params(key, mid_dim, state_dim, action_dim):
    """Deterministic init mirroring nn.Linear default (U[-1/sqrt(fan_in), +1/sqrt(fan_in)]).
    Weights stored as (in_features, out_features) so the kernel can do x @ W."""
    dims = [(state_dim + action_dim, mid_dim),
            (mid_dim, mid_dim),
            (mid_dim, mid_dim),
            (mid_dim, 1)]
    params = []
    for (fan_in, fan_out) in dims:
        key, kw, kb = jax.random.split(key, 3)
        bound = 1.0 / jnp.sqrt(jnp.float32(fan_in))
        w = jax.random.uniform(kw, (fan_in, fan_out), jnp.float32, -bound, bound)
        b = jax.random.uniform(kb, (1, fan_out), jnp.float32, -bound, bound)
        params.append((w, b))
    return params


def critic_forward_ref(state, action, params):
    x = jnp.concatenate([state, action], axis=1)
    (w1, b1), (w2, b2), (w3, b3), (w4, b4) = params
    h = jnp.maximum(x @ w1 + b1, 0.0)
    h = jnp.maximum(h @ w2 + b2, 0.0)
    h = jnp.maximum(h @ w3 + b3, 0.0)
    return h @ w4 + b4


if __name__ == "__main__":
    mid_dim, state_dim, action_dim, batch = 32, 12, 4, 20

    key = jax.random.PRNGKey(0)
    kp, ks, ka = jax.random.split(key, 3)

    params = init_critic_params(kp, mid_dim, state_dim, action_dim)
    state = jax.random.normal(ks, (batch, state_dim), jnp.float32)
    action = jax.random.normal(ka, (batch, action_dim), jnp.float32)

    # Small block_batch so the test exercises a multi-step grid + batch padding.
    q = critic_forward(state, action, params, block_batch=8)
    q = jax.block_until_ready(q)

    q_ref = critic_forward_ref(state, action, params)
    assert q.shape == (batch, 1), q.shape
    assert jnp.allclose(q, q_ref, atol=1e-5, rtol=1e-5), (q, q_ref)

    print("KERNEL_OK")
</pallas_src>

<mosaic_0001>
module attributes {stable_mosaic.version = 11 : i64} {
  func.func @_critic_kernel(%arg0: i32, %arg1: memref<8x12xf32, #tpu.memory_space<vmem>>, %arg2: memref<8x4xf32, #tpu.memory_space<vmem>>, %arg3: memref<12x128xf32, #tpu.memory_space<vmem>>, %arg4: memref<4x128xf32, #tpu.memory_space<vmem>>, %arg5: memref<1x128xf32, #tpu.memory_space<vmem>>, %arg6: memref<128x128xf32, #tpu.memory_space<vmem>>, %arg7: memref<1x128xf32, #tpu.memory_space<vmem>>, %arg8: memref<128x128xf32, #tpu.memory_space<vmem>>, %arg9: memref<1x128xf32, #tpu.memory_space<vmem>>, %arg10: memref<1x128xf32, #tpu.memory_space<vmem>>, %arg11: memref<1x1xf32, #tpu.memory_space<vmem>>, %arg12: memref<8x1xf32, #tpu.memory_space<vmem>>) attributes {dimension_semantics = [#tpu.dimension_semantics<parallel>], iteration_bounds = array<i64: 3>, scalar_prefetch = 0 : i64, scratch_operands = 0 : i64, tpu.core_type = #tpu.core_type<tc>, window_params = [{transform_indices = @transform_0, window_bounds = array<i64: 8, 12>}, {transform_indices = @transform_1, window_bounds = array<i64: 8, 4>}, {pipeline_mode = #tpu.pipeline_mode<synchronous>, transform_indices = @transform_2, window_bounds = array<i64: 12, 128>}, {pipeline_mode = #tpu.pipeline_mode<synchronous>, transform_indices = @transform_3, window_bounds = array<i64: 4, 128>}, {pipeline_mode = #tpu.pipeline_mode<synchronous>, transform_indices = @transform_4, window_bounds = array<i64: 1, 128>}, {pipeline_mode = #tpu.pipeline_mode<synchronous>, transform_indices = @transform_5, window_bounds = array<i64: 128, 128>}, {pipeline_mode = #tpu.pipeline_mode<synchronous>, transform_indices = @transform_6, window_bounds = array<i64: 1, 128>}, {pipeline_mode = #tpu.pipeline_mode<synchronous>, transform_indices = @transform_7, window_bounds = array<i64: 128, 128>}, {pipeline_mode = #tpu.pipeline_mode<synchronous>, transform_indices = @transform_8, window_bounds = array<i64: 1, 128>}, {pipeline_mode = #tpu.pipeline_mode<synchronous>, transform_indices = @transform_9, window_bounds = array<i64: 1, 128>}, {pipeline_mode = #tpu.pipeline_mode<synchronous>, transform_indices = @transform_10, window_bounds = array<i64: 1, 1>}, {transform_indices = @transform_11, window_bounds = array<i64: 8, 1>}]} {
    %c0 = arith.constant 0 : index
    %c0_0 = arith.constant 0 : index
    %0 = vector.load %arg1[%c0, %c0_0] : memref<8x12xf32, #tpu.memory_space<vmem>>, vector<8x12xf32>
    %c0_1 = arith.constant 0 : index
    %c0_2 = arith.constant 0 : index
    %1 = vector.load %arg2[%c0_1, %c0_2] : memref<8x4xf32, #tpu.memory_space<vmem>>, vector<8x4xf32>
    %c0_3 = arith.constant 0 : index
    %c0_4 = arith.constant 0 : index
    %2 = vector.load %arg3[%c0_3, %c0_4] : memref<12x128xf32, #tpu.memory_space<vmem>>, vector<12x128xf32>
    %cst = arith.constant dense<0.000000e+00> : vector<8x128xf32>
    %3 = tpu.matmul %0, %2, %cst {dimension_numbers = #tpu.dot_dimension_numbers<[1], [0], [0], [1], [0, 0, 1, 1], [], []>} : vector<8x12xf32>, vector<12x128xf32>, vector<8x128xf32> -> vector<8x128xf32>
    %c0_5 = arith.constant 0 : index
    %c0_6 = arith.constant 0 : index
    %4 = vector.load %arg4[%c0_5, %c0_6] : memref<4x128xf32, #tpu.memory_space<vmem>>, vector<4x128xf32>
    %cst_7 = arith.constant dense<0.000000e+00> : vector<8x128xf32>
    %5 = tpu.matmul %1, %4, %cst_7 {dimension_numbers = #tpu.dot_dimension_numbers<[1], [0], [0], [1], [0, 0, 1, 1], [], []>} : vector<8x4xf32>, vector<4x128xf32>, vector<8x128xf32> -> vector<8x128xf32>
    %6 = arith.addf %3, %5 : vector<8x128xf32>
    %c0_8 = arith.constant 0 : index
    %c0_9 = arith.constant 0 : index
    %7 = vector.load %arg5[%c0_8, %c0_9] : memref<1x128xf32, #tpu.memory_space<vmem>>, vector<1x128xf32>
    %8 = vector.broadcast %7 : vector<1x128xf32> to vector<8x128xf32>
    %9 = arith.addf %6, %8 : vector<8x128xf32>
    %cst_10 = arith.constant 0.000000e+00 : f32
    %10 = vector.broadcast %cst_10 : f32 to vector<8x128xf32>
    %11 = arith.maximumf %9, %10 : vector<8x128xf32>
    %c0_11 = arith.constant 0 : index
    %c0_12 = arith.constant 0 : index
    %12 = vector.load %arg6[%c0_11, %c0_12] : memref<128x128xf32, #tpu.memory_space<vmem>>, vector<128x128xf32>
    %cst_13 = arith.constant dense<0.000000e+00> : vector<8x128xf32>
    %13 = tpu.matmul %11, %12, %cst_13 {dimension_numbers = #tpu.dot_dimension_numbers<[1], [0], [0], [1], [0, 0, 1, 1], [], []>} : vector<8x128xf32>, vector<128x128xf32>, vector<8x128xf32> -> vector<8x128xf32>
    %c0_14 = arith.constant 0 : index
    %c0_15 = arith.constant 0 : index
    %14 = vector.load %arg7[%c0_14, %c0_15] : memref<1x128xf32, #tpu.memory_space<vmem>>, vector<1x128xf32>
    %15 = vector.broadcast %14 : vector<1x128xf32> to vector<8x128xf32>
    %16 = arith.addf %13, %15 : vector<8x128xf32>
    %cst_16 = arith.constant 0.000000e+00 : f32
    %17 = vector.broadcast %cst_16 : f32 to vector<8x128xf32>
    %18 = arith.maximumf %16, %17 : vector<8x128xf32>
    %c0_17 = arith.constant 0 : index
    %c0_18 = arith.constant 0 : index
    %19 = vector.load %arg8[%c0_17, %c0_18] : memref<128x128xf32, #tpu.memory_space<vmem>>, vector<128x128xf32>
    %cst_19 = arith.constant dense<0.000000e+00> : vector<8x128xf32>
    %20 = tpu.matmul %18, %19, %cst_19 {dimension_numbers = #tpu.dot_dimension_numbers<[1], [0], [0], [1], [0, 0, 1, 1], [], []>} : vector<8x128xf32>, vector<128x128xf32>, vector<8x128xf32> -> vector<8x128xf32>
    %c0_20 = arith.constant 0 : index
    %c0_21 = arith.constant 0 : index
    %21 = vector.load %arg9[%c0_20, %c0_21] : memref<1x128xf32, #tpu.memory_space<vmem>>, vector<1x128xf32>
    %22 = vector.broadcast %21 : vector<1x128xf32> to vector<8x128xf32>
    %23 = arith.addf %20, %22 : vector<8x128xf32>
    %cst_22 = arith.constant 0.000000e+00 : f32
    %24 = vector.broadcast %cst_22 : f32 to vector<8x128xf32>
    %25 = arith.maximumf %23, %24 : vector<8x128xf32>
    %c0_23 = arith.constant 0 : index
    %c0_24 = arith.constant 0 : index
    %26 = vector.load %arg10[%c0_23, %c0_24] : memref<1x128xf32, #tpu.memory_space<vmem>>, vector<1x128xf32>
    %27 = vector.broadcast %26 : vector<1x128xf32> to vector<8x128xf32>
    %28 = arith.mulf %25, %27 : vector<8x128xf32>
    %cst_25 = arith.constant dense<0.000000e+00> : vector<8xf32>
    %29 = vector.multi_reduction <add>, %28, %cst_25 [1] : vector<8x128xf32> to vector<8xf32>
    %30 = vector.shape_cast %29 : vector<8xf32> to vector<8x1xf32>
    %c0_26 = arith.constant 0 : index
    %c0_27 = arith.constant 0 : index
    %31 = vector.load %arg11[%c0_26, %c0_27] : memref<1x1xf32, #tpu.memory_space<vmem>>, vector<1x1xf32>
    %32 = vector.broadcast %31 : vector<1x1xf32> to vector<8x1xf32>
    %33 = arith.addf %30, %32 : vector<8x1xf32>
    %c0_28 = arith.constant 0 : index
    %c0_29 = arith.constant 0 : index
    %34 = vector.load %arg12[%c0_28, %c0_29] : memref<8x1xf32, #tpu.memory_space<vmem>>, vector<8x1xf32>
    tpu.vector_store %arg12[%c0_28, %c0_29], %33 {strides = array<i32>} : memref<8x1xf32, #tpu.memory_space<vmem>>, vector<8x1xf32>,
    return
  }
  func.func @transform_0(%arg0: i32) -> (i32, i32) {
    %c0_i32 = arith.constant 0 : i32
    %c0_i32_0 = arith.constant 0 : i32
    return %arg0, %c0_i32 : i32, i32
  }
  func.func @transform_1(%arg0: i32) -> (i32, i32) {
    %c0_i32 = arith.constant 0 : i32
    %c0_i32_0 = arith.constant 0 : i32
    return %arg0, %c0_i32 : i32, i32
  }
  func.func @transform_2(%arg0: i32) -> (i32, i32) {
    %c0_i32 = arith.constant 0 : i32
    %c0_i32_0 = arith.constant 0 : i32
    %c0_i32_1 = arith.constant 0 : i32
    return %c0_i32, %c0_i32_0 : i32, i32
  }
  func.func @transform_3(%arg0: i32) -> (i32, i32) {
    %c0_i32 = arith.constant 0 : i32
    %c0_i32_0 = arith.constant 0 : i32
    %c0_i32_1 = arith.constant 0 : i32
    return %c0_i32, %c0_i32_0 : i32, i32
  }
  func.func @transform_4(%arg0: i32) -> (i32, i32) {
    %c0_i32 = arith.constant 0 : i32
    %c0_i32_0 = arith.constant 0 : i32
    %c0_i32_1 = arith.constant 0 : i32
    return %c0_i32, %c0_i32_0 : i32, i32
  }
  func.func @transform_5(%arg0: i32) -> (i32, i32) {
    %c0_i32 = arith.constant 0 : i32
    %c0_i32_0 = arith.constant 0 : i32
    %c0_i32_1 = arith.constant 0 : i32
    return %c0_i32, %c0_i32_0 : i32, i32
  }
  func.func @transform_6(%arg0: i32) -> (i32, i32) {
    %c0_i32 = arith.constant 0 : i32
    %c0_i32_0 = arith.constant 0 : i32
    %c0_i32_1 = arith.constant 0 : i32
    return %c0_i32, %c0_i32_0 : i32, i32
  }
  func.func @transform_7(%arg0: i32) -> (i32, i32) {
    %c0_i32 = arith.constant 0 : i32
    %c0_i32_0 = arith.constant 0 : i32
    %c0_i32_1 = arith.constant 0 : i32
    return %c0_i32, %c0_i32_0 : i32, i32
  }
  func.func @transform_8(%arg0: i32) -> (i32, i32) {
    %c0_i32 = arith.constant 0 : i32
    %c0_i32_0 = arith.constant 0 : i32
    %c0_i32_1 = arith.constant 0 : i32
    return %c0_i32, %c0_i32_0 : i32, i32
  }
  func.func @transform_9(%arg0: i32) -> (i32, i32) {
    %c0_i32 = arith.constant 0 : i32
    %c0_i32_0 = arith.constant 0 : i32
    %c0_i32_1 = arith.constant 0 : i32
    return %c0_i32, %c0_i32_0 : i32, i32
  }
  func.func @transform_10(%arg0: i32) -> (i32, i32) {
    %c0_i32 = arith.constant 0 : i32
    %c0_i32_0 = arith.constant 0 : i32
    %c0_i32_1 = arith.constant 0 : i32
    return %c0_i32, %c0_i32_0 : i32, i32
  }
  func.func @transform_11(%arg0: i32) -> (i32, i32) {
    %c0_i32 = arith.constant 0 : i32
    %c0_i32_0 = arith.constant 0 : i32
    return %arg0, %c0_i32 : i32, i32
  }
}

</mosaic_0001>

<llo_original>
// kernel: tpu_custom_call.1
$region0: #{tpu_custom_call.1}
  #allocation0 [shape = 'u32[]', space=smem, size = 0x4, offset = 0x4, fixed_abs, tag = 'smem constant byte address 0x4 - core index']
  #allocation1 [shape = 'u32[72,128]{1,0:T(1,128)}', space=vmem, size = 0x9000, scoped, tag = 'internal scratch']
  #allocation2 [shape = 'f32[1,1]{1,0:T(1,128)S(1)}', space=vmem, size = 0x200, scoped, tag = 'scoped memory for tpu_custom_call.1']
  %s0 = inlined_call_operand.vmem [shape: f32[24,12], index: 0, kind: input, shape index: {}]
  %s1 = inlined_call_operand.vmem [shape: f32[24,4], index: 1, kind: input, shape index: {}]
  %s2 = inlined_call_operand.vmem [shape: f32[12,128], index: 2, kind: input, shape index: {}]
  %s3 = inlined_call_operand.vmem [shape: f32[4,128], index: 3, kind: input, shape index: {}]
  %s4 = inlined_call_operand.vmem [shape: f32[1,128], index: 4, kind: input, shape index: {}]
  %s5 = inlined_call_operand.hbm [shape: f32[128,128], index: 5, kind: input, shape index: {}]
  %s6 = inlined_call_operand.vmem [shape: f32[1,128], index: 6, kind: input, shape index: {}]
  %s7 = inlined_call_operand.hbm [shape: f32[128,128], index: 7, kind: input, shape index: {}]
  %s8 = inlined_call_operand.vmem [shape: f32[1,128], index: 8, kind: input, shape index: {}]
  %s9 = inlined_call_operand.vmem [shape: f32[1,128], index: 9, kind: input, shape index: {}]
  %s10 = inlined_call_operand.<no memory space> [shape: f32[1,1], index: 10, kind: input, shape index: {}]
  %s11 = inlined_call_operand.vmem [shape: f32[24,1], index: 11, kind: output, shape index: {}]
  %s12 = sld [smem:[#allocation0]]
  $region85: #{tpu_custom_call.1} parent=0
    _
  %s14 = ssub.s32 1, %s12
  %s15 = scalar_select 0, %s14, %s12
  %v16 = vstv %s10
  %17 = vst [vmem:[#allocation2] sm:$0x1] %v16
  $region1: #{tpu_custom_call.1} parent=0
    #allocation3 [shape = 'u8[65536]{0}', space=vmem, size = 0x10000, scoped, tag = 'input window, operand 5, single buffered']
    #allocation4 [shape = 's32[2]{0}', space=sflag, size = 0x8, scoped, tag = 'scoped memory for tpu_custom_call.1']
    #allocation5 [shape = 'u8[65536]{0}', space=vmem, size = 0x10000, scoped, tag = 'input window, operand 7, single buffered']
    #allocation6 [shape = 's32[1]{0}', space=sflag, size = 0x4, scoped, tag = 'scoped memory for tpu_custom_call.1']
    %18 = vsyncpa [#allocation4], 0
    %19 = vsyncpa [#allocation6], 0
    loop: start=0, step=1, limit=5
    $region2: #{tpu_custom_call.1} parent=1 // loop_pre_header
      _
    $region3: #{tpu_custom_call.1} parent=1 // loop_header
      %s21 = sphi 0, %s25
      %p22 = scmp.ge.s32.totalorder %s21, 5
      %s31 = sphi 0, %s33
      %s34 = sphi 0, %s31
      %s35 = sphi 0, %s34
      %s51 = sphi 0, %s35
      %s57 = sphi 0, %s59
      %s60 = sphi 0, %s57
      %s61 = sphi 0, %s60
      %s77 = sphi 0, %s61
      %s81 = sphi 0, %s81
      %s83 = sphi 0, %s81
      %s84 = sphi 0, %s83
      %s98 = sphi 0, %s84
      %s102 = sphi 0, %s102
      %s104 = sphi 0, %s102
      %s105 = sphi 0, %s104
      %s119 = sphi 0, %s105
      %s123 = sphi 0, %s123
      %s125 = sphi 0, %s123
      %s126 = sphi 0, %s125
      %s140 = sphi 0, %s126
      %s144 = sphi 0, %s144
      %s146 = sphi 0, %s144
      %s147 = sphi 0, %s146
      %s161 = sphi 0, %s147
      %s165 = sphi 0, %s165
      %s167 = sphi 0, %s165
      %s168 = sphi 0, %s167
      %s182 = sphi 0, %s168
      %s186 = sphi 0, %s186
      %s188 = sphi 0, %s186
      %s189 = sphi 0, %s188
      %s203 = sphi 0, %s189
      %s207 = sphi 0, %s207
      %s209 = sphi 0, %s207
      %s210 = sphi 0, %s209
      %s224 = sphi 0, %s210
      %s228 = sphi 0, %s228
      %s230 = sphi 0, %s228
      %s231 = sphi 0, %s230
      %s245 = sphi 0, %s231
      %s249 = sphi 0, %s249
      %s251 = sphi 0, %s249
      %s252 = sphi 0, %s251
      %s266 = sphi 0, %s252
      %s272 = sphi 0, %s274
      %s275 = sphi 0, %s272
      %s276 = sphi 0, %s275
      %s292 = sphi 0, %s276
    $region4: #{tpu_custom_call.1} parent=1 // loop_header_branch
      %24 = sbr.rel (%p22) target = $region8
    $region5: #{tpu_custom_call.1} parent=1 // loop_body
      %s26 = ssub.s32 %s21, 1
      %s27 = ssub.s32 %s21, 2
      %s28 = sadd.s32 %s21, 1
      %s29 = ssub.s32 %s21, %s28
      %p30 = scmp.eq.s32.totalorder %s29, 0
      %s32 = sadd.s32 %s31, 1
      %s33 = scalar_select %p30, %s31, %s32
      %p36 = pneg %p30
      %p37 = scmp.eq.s32.totalorder %s21, 2
      %p38 = por %p36, %p37
      %p39 = scmp.ne.s32.totalorder %s31, %s34
      %p40 = scmp.eq.s32.totalorder %s21, 0
      %p41 = por %p39, %p40
      %p42 = scmp.ne.s32.totalorder %s31, %s34
      %p43 = scmp.eq.s32.totalorder %s26, 2
      %p44 = por %p42, %p43
      %p45 = scmp.ne.s32.totalorder %s34, %s35
      %p46 = scmp.eq.s32.totalorder %s26, 0
      %p47 = por %p45, %p46
      %p48 = scmp.ne.s32.totalorder %s34, %s35
      %p49 = scmp.eq.s32.totalorder %s27, 2
      %p50 = por %p48, %p49
      %p52 = scmp.ne.s32.totalorder %s35, %s51
      %p53 = scmp.eq.s32.totalorder %s27, 0
      %p54 = por %p52, %p53
      %s55 = ssub.s32 %s21, %s28
      %p56 = scmp.eq.s32.totalorder %s55, 0
      %s58 = sadd.s32 %s57, 1
      %s59 = scalar_select %p56, %s57, %s58
      %p62 = pneg %p56
      %p63 = scmp.eq.s32.totalorder %s21, 2
      %p64 = por %p62, %p63
      %p65 = scmp.ne.s32.totalorder %s57, %s60
      %p66 = scmp.eq.s32.totalorder %s21, 0
      %p67 = por %p65, %p66
      %p68 = scmp.ne.s32.totalorder %s57, %s60
      %p69 = scmp.eq.s32.totalorder %s26, 2
      %p70 = por %p68, %p69
      %p71 = scmp.ne.s32.totalorder %s60, %s61
      %p72 = scmp.eq.s32.totalorder %s26, 0
      %p73 = por %p71, %p72
      %p74 = scmp.ne.s32.totalorder %s60, %s61
      %p75 = scmp.eq.s32.totalorder %s27, 2
      %p76 = por %p74, %p75
      %p78 = scmp.ne.s32.totalorder %s61, %s77
      %p79 = scmp.eq.s32.totalorder %s27, 0
      %p80 = por %p78, %p79
      %s82 = sadd.s32 %s81, 1
      %p85 = scmp.eq.s32.totalorder %s21, 2
      %p86 = scmp.ne.s32.totalorder %s81, %s83
      %p87 = scmp.eq.s32.totalorder %s21, 0
      %p88 = por %p86, %p87
      %p89 = scmp.ne.s32.totalorder %s81, %s83
      %p90 = scmp.eq.s32.totalorder %s26, 2
      %p91 = por %p89, %p90
      %p92 = scmp.ne.s32.totalorder %s83, %s84
      %p93 = scmp.eq.s32.totalorder %s26, 0
      %p94 = por %p92, %p93
      %p95 = scmp.ne.s32.totalorder %s83, %s84
      %p96 = scmp.eq.s32.totalorder %s27, 2
      %p97 = por %p95, %p96
      %p99 = scmp.ne.s32.totalorder %s84, %s98
      %p100 = scmp.eq.s32.totalorder %s27, 0
      %p101 = por %p99, %p100
      %s103 = sadd.s32 %s102, 1
      %p106 = scmp.eq.s32.totalorder %s21, 2
      %p107 = scmp.ne.s32.totalorder %s102, %s104
      %p108 = scmp.eq.s32.totalorder %s21, 0
      %p109 = por %p107, %p108
      %p110 = scmp.ne.s32.totalorder %s102, %s104
      %p111 = scmp.eq.s32.totalorder %s26, 2
      %p112 = por %p110, %p111
      %p113 = scmp.ne.s32.totalorder %s104, %s105
      %p114 = scmp.eq.s32.totalorder %s26, 0
      %p115 = por %p113, %p114
      %p116 = scmp.ne.s32.totalorder %s104, %s105
      %p117 = scmp.eq.s32.totalorder %s27, 2
      %p118 = por %p116, %p117
      %p120 = scmp.ne.s32.totalorder %s105, %s119
      %p121 = scmp.eq.s32.totalorder %s27, 0
      %p122 = por %p120, %p121
      %s124 = sadd.s32 %s123, 1
      %p127 = scmp.eq.s32.totalorder %s21, 2
      %p128 = scmp.ne.s32.totalorder %s123, %s125
      %p129 = scmp.eq.s32.totalorder %s21, 0
      %p130 = por %p128, %p129
      %p131 = scmp.ne.s32.totalorder %s123, %s125
      %p132 = scmp.eq.s32.totalorder %s26, 2
      %p133 = por %p131, %p132
      %p134 = scmp.ne.s32.totalorder %s125, %s126
      %p135 = scmp.eq.s32.totalorder %s26, 0
      %p136 = por %p134, %p135
      %p137 = scmp.ne.s32.totalorder %s125, %s126
      %p138 = scmp.eq.s32.totalorder %s27, 2
      %p139 = por %p137, %p138
      %p141 = scmp.ne.s32.totalorder %s126, %s140
      %p142 = scmp.eq.s32.totalorder %s27, 0
      %p143 = por %p141, %p142
      %s145 = sadd.s32 %s144, 1
      %p148 = scmp.eq.s32.totalorder %s21, 2
      %p149 = scmp.ne.s32.totalorder %s144, %s146
      %p150 = scmp.eq.s32.totalorder %s21, 0
      %p151 = por %p149, %p150
      %p152 = scmp.ne.s32.totalorder %s144, %s146
      %p153 = scmp.eq.s32.totalorder %s26, 2
      %p154 = por %p152, %p153
      %p155 = scmp.ne.s32.totalorder %s146, %s147
      %p156 = scmp.eq.s32.totalorder %s26, 0
      %p157 = por %p155, %p156
      %p158 = scmp.ne.s32.totalorder %s146, %s147
      %p159 = scmp.eq.s32.totalorder %s27, 2
      %p160 = por %p158, %p159
      %p162 = scmp.ne.s32.totalorder %s147, %s161
      %p163 = scmp.eq.s32.totalorder %s27, 0
      %p164 = por %p162, %p163
      %s166 = sadd.s32 %s165, 1
      %p169 = scmp.eq.s32.totalorder %s21, 2
      %p170 = scmp.ne.s32.totalorder %s165, %s167
      %p171 = scmp.eq.s32.totalorder %s21, 0
      %p172 = por %p170, %p171
      %p173 = scmp.ne.s32.totalorder %s165, %s167
      %p174 = scmp.eq.s32.totalorder %s26, 2
      %p175 = por %p173, %p174
      %p176 = scmp.ne.s32.totalorder %s167, %s168
      %p177 = scmp.eq.s32.totalorder %s26, 0
      %p178 = por %p176, %p177
      %p179 = scmp.ne.s32.totalorder %s167, %s168
      %p180 = scmp.eq.s32.totalorder %s27, 2
      %p181 = por %p179, %p180
      %p183 = scmp.ne.s32.totalorder %s168, %s182
      %p184 = scmp.eq.s32.totalorder %s27, 0
      %p185 = por %p183, %p184
      %s187 = sadd.s32 %s186, 1
      %p190 = scmp.eq.s32.totalorder %s21, 2
      %p191 = scmp.ne.s32.totalorder %s186, %s188
      %p192 = scmp.eq.s32.totalorder %s21, 0
      %p193 = por %p191, %p192
      %p194 = scmp.ne.s32.totalorder %s186, %s188
      %p195 = scmp.eq.s32.totalorder %s26, 2
      %p196 = por %p194, %p195
      %p197 = scmp.ne.s32.totalorder %s188, %s189
      %p198 = scmp.eq.s32.totalorder %s26, 0
      %p199 = por %p197, %p198
      %p200 = scmp.ne.s32.totalorder %s188, %s189
      %p201 = scmp.eq.s32.totalorder %s27, 2
      %p202 = por %p200, %p201
      %p204 = scmp.ne.s32.totalorder %s189, %s203
      %p205 = scmp.eq.s32.totalorder %s27, 0
      %p206 = por %p204, %p205
      %s208 = sadd.s32 %s207, 1
      %p211 = scmp.eq.s32.totalorder %s21, 2
      %p212 = scmp.ne.s32.totalorder %s207, %s209
      %p213 = scmp.eq.s32.totalorder %s21, 0
      %p214 = por %p212, %p213
      %p215 = scmp.ne.s32.totalorder %s207, %s209
      %p216 = scmp.eq.s32.totalorder %s26, 2
      %p217 = por %p215, %p216
      %p218 = scmp.ne.s32.totalorder %s209, %s210
      %p219 = scmp.eq.s32.totalorder %s26, 0
      %p220 = por %p218, %p219
      %p221 = scmp.ne.s32.totalorder %s209, %s210
      %p222 = scmp.eq.s32.totalorder %s27, 2
      %p223 = por %p221, %p222
      %p225 = scmp.ne.s32.totalorder %s210, %s224
      %p226 = scmp.eq.s32.totalorder %s27, 0
      %p227 = por %p225, %p226
      %s229 = sadd.s32 %s228, 1
      %p232 = scmp.eq.s32.totalorder %s21, 2
      %p233 = scmp.ne.s32.totalorder %s228, %s230
      %p234 = scmp.eq.s32.totalorder %s21, 0
      %p235 = por %p233, %p234
      %p236 = scmp.ne.s32.totalorder %s228, %s230
      %p237 = scmp.eq.s32.totalorder %s26, 2
      %p238 = por %p236, %p237
      %p239 = scmp.ne.s32.totalorder %s230, %s231
      %p240 = scmp.eq.s32.totalorder %s26, 0
      %p241 = por %p239, %p240
      %p242 = scmp.ne.s32.totalorder %s230, %s231
      %p243 = scmp.eq.s32.totalorder %s27, 2
      %p244 = por %p242, %p243
      %p246 = scmp.ne.s32.totalorder %s231, %s245
      %p247 = scmp.eq.s32.totalorder %s27, 0
      %p248 = por %p246, %p247
      %s250 = sadd.s32 %s249, 1
      %p253 = scmp.eq.s32.totalorder %s21, 2
      %p254 = scmp.ne.s32.totalorder %s249, %s251
      %p255 = scmp.eq.s32.totalorder %s21, 0
      %p256 = por %p254, %p255
      %p257 = scmp.ne.s32.totalorder %s249, %s251
      %p258 = scmp.eq.s32.totalorder %s26, 2
      %p259 = por %p257, %p258
      %p260 = scmp.ne.s32.totalorder %s251, %s252
      %p261 = scmp.eq.s32.totalorder %s26, 0
      %p262 = por %p260, %p261
      %p263 = scmp.ne.s32.totalorder %s251, %s252
      %p264 = scmp.eq.s32.totalorder %s27, 2
      %p265 = por %p263, %p264
      %p267 = scmp.ne.s32.totalorder %s252, %s266
      %p268 = scmp.eq.s32.totalorder %s27, 0
      %p269 = por %p267, %p268
      %s270 = ssub.s32 %s21, %s28
      %p271 = scmp.eq.s32.totalorder %s270, 0
      %s273 = sadd.s32 %s272, 1
      %s274 = scalar_select %p271, %s272, %s273
      %p277 = pneg %p271
      %p278 = scmp.eq.s32.totalorder %s21, 2
      %p279 = por %p277, %p278
      %p280 = scmp.ne.s32.totalorder %s272, %s275
      %p281 = scmp.eq.s32.totalorder %s21, 0
      %p282 = por %p280, %p281
      %p283 = scmp.ne.s32.totalorder %s272, %s275
      %p284 = scmp.eq.s32.totalorder %s26, 2
      %p285 = por %p283, %p284
      %p286 = scmp.ne.s32.totalorder %s275, %s276
      %p287 = scmp.eq.s32.totalorder %s26, 0
      %p288 = por %p286, %p287
      %p289 = scmp.ne.s32.totalorder %s275, %s276
      %p290 = scmp.eq.s32.totalorder %s27, 2
      %p291 = por %p289, %p290
      %p293 = scmp.ne.s32.totalorder %s276, %s292
      %p294 = scmp.eq.s32.totalorder %s27, 0
      %p295 = por %p293, %p294
      %p296 = scmp.le.s32.totalorder 1, %s21
      %p297 = scmp.lt.s32.totalorder %s21, 4
      %p298 = pnand %p296, %p297
      %p299 = pneg %p298
      // Predicated region
      $region9: #{tpu_custom_call.1} parent=5 // pred_check
        _
      $region10: #{tpu_custom_call.1} parent=5 // pred_check_branch
        %301 = sbr.rel (%p298) target = $region12
      $region11: #{tpu_custom_call.1} parent=5 // pred_region
        %s302 = ssub.s32 %s21, 1
        // Predicated region
        $region13: #{tpu_custom_call.1} parent=11 // pred_check
          %p303 = pneg %p94
        $region14: #{tpu_custom_call.1} parent=11 // pred_check_branch
          %305 = sbr.rel (%p303) target = $region16
        $region15: #{tpu_custom_call.1} parent=11 // pred_region
          _
        $region16: #{tpu_custom_call.1} parent=11 // pred_fallthru
          _
        // Predicated region
        $region17: #{tpu_custom_call.1} parent=11 // pred_check
          %p306 = pneg %p115
        $region18: #{tpu_custom_call.1} parent=11 // pred_check_branch
          %308 = sbr.rel (%p306) target = $region20
        $region19: #{tpu_custom_call.1} parent=11 // pred_region
          _
        $region20: #{tpu_custom_call.1} parent=11 // pred_fallthru
          _
        // Predicated region
        $region21: #{tpu_custom_call.1} parent=11 // pred_check
          %p309 = pneg %p136
        $region22: #{tpu_custom_call.1} parent=11 // pred_check_branch
          %311 = sbr.rel (%p309) target = $region24
        $region23: #{tpu_custom_call.1} parent=11 // pred_region
          _
        $region24: #{tpu_custom_call.1} parent=11 // pred_fallthru
          _
        // Predicated region
        $region25: #{tpu_custom_call.1} parent=11 // pred_check
          %p312 = pneg %p157
        $region26: #{tpu_custom_call.1} parent=11 // pred_check_branch
          %314 = sbr.rel (%p312) target = $region28
        $region27: #{tpu_custom_call.1} parent=11 // pred_region
          %316 = vsyncadd [#allocation4], 0
          %s317 = sshll.u32 %s5, 4
          %s318 = int_to_ptr.hbm [resolvable:$true] %s317
          %s319 = sshll.u32 [#allocation3], 4
          %s320 = int_to_ptr.vmem [resolvable:$true] %s319
          %325 = dma.hbm_to_vmem [thread:$0]  %s318, 2048, %s320, [#allocation4], 128, 128, 8
        $region28: #{tpu_custom_call.1} parent=11 // pred_fallthru
          _
        // Predicated region
        $region29: #{tpu_custom_call.1} parent=11 // pred_check
          %p326 = pneg %p178
        $region30: #{tpu_custom_call.1} parent=11 // pred_check_branch
          %328 = sbr.rel (%p326) target = $region32
        $region31: #{tpu_custom_call.1} parent=11 // pred_region
          _
        $region32: #{tpu_custom_call.1} parent=11 // pred_fallthru
          _
        // Predicated region
        $region33: #{tpu_custom_call.1} parent=11 // pred_check
          %p329 = pneg %p199
        $region34: #{tpu_custom_call.1} parent=11 // pred_check_branch
          %331 = sbr.rel (%p329) target = $region36
        $region35: #{tpu_custom_call.1} parent=11 // pred_region
          %333 = vsyncadd [#allocation6], 0
          %s334 = sshll.u32 %s7, 4
          %s335 = int_to_ptr.hbm [resolvable:$true] %s334
          %s336 = sshll.u32 [#allocation5], 4
          %s337 = int_to_ptr.vmem [resolvable:$true] %s336
          %342 = dma.hbm_to_vmem [thread:$0]  %s335, 2048, %s337, [#allocation6], 128, 128, 8
        $region36: #{tpu_custom_call.1} parent=11 // pred_fallthru
          _
        // Predicated region
        $region37: #{tpu_custom_call.1} parent=11 // pred_check
          %p343 = pneg %p220
        $region38: #{tpu_custom_call.1} parent=11 // pred_check_branch
          %345 = sbr.rel (%p343) target = $region40
        $region39: #{tpu_custom_call.1} parent=11 // pred_region
          _
        $region40: #{tpu_custom_call.1} parent=11 // pred_fallthru
          _
        // Predicated region
        $region41: #{tpu_custom_call.1} parent=11 // pred_check
          %p346 = pneg %p241
        $region42: #{tpu_custom_call.1} parent=11 // pred_check_branch
          %348 = sbr.rel (%p346) target = $region44
        $region43: #{tpu_custom_call.1} parent=11 // pred_region
          _
        $region44: #{tpu_custom_call.1} parent=11 // pred_fallthru
          _
        // Predicated region
        $region45: #{tpu_custom_call.1} parent=11 // pred_check
          %p349 = pneg %p262
        $region46: #{tpu_custom_call.1} parent=11 // pred_check_branch
          %351 = sbr.rel (%p349) target = $region48
        $region47: #{tpu_custom_call.1} parent=11 // pred_region
          _
        $region48: #{tpu_custom_call.1} parent=11 // pred_fallthru
          _
      $region12: #{tpu_custom_call.1} parent=5 // pred_fallthru
        _
      %p352 = scmp.lt.s32.totalorder %s21, 3
      // Predicated region
      $region49: #{tpu_custom_call.1} parent=5 // pred_check
        %p353 = pneg %p352
      $region50: #{tpu_custom_call.1} parent=5 // pred_check_branch
        %355 = sbr.rel (%p353) target = $region52
      $region51: #{tpu_custom_call.1} parent=5 // pred_region
        // Predicated region
        $region53: #{tpu_custom_call.1} parent=51 // pred_check
          %p356 = pneg %p41
        $region54: #{tpu_custom_call.1} parent=51 // pred_check_branch
          %358 = sbr.rel (%p356) target = $region56
        $region55: #{tpu_custom_call.1} parent=51 // pred_region
          %p359 = scmp.lt.s32.totalorder %s21, 2
          %s360 = scalar_select %p359, %s21, 2
          %s361 = smul.addr %s360, 8
          %s362 = scalar_lea.vmem %s0, %s361
        $region56: #{tpu_custom_call.1} parent=51 // pred_fallthru
          _
        // Predicated region
        $region57: #{tpu_custom_call.1} parent=51 // pred_check
          %p363 = pneg %p67
        $region58: #{tpu_custom_call.1} parent=51 // pred_check_branch
          %365 = sbr.rel (%p363) target = $region60
        $region59: #{tpu_custom_call.1} parent=51 // pred_region
          %p366 = scmp.lt.s32.totalorder %s21, 2
          %s367 = scalar_select %p366, %s21, 2
          %s368 = smul.addr %s367, 8
          %s369 = scalar_lea.vmem %s1, %s368
        $region60: #{tpu_custom_call.1} parent=51 // pred_fallthru
          _
      $region52: #{tpu_custom_call.1} parent=5 // pred_fallthru
        _
      %p370 = scmp.le.s32.totalorder 1, %s21
      %p371 = scmp.lt.s32.totalorder %s21, 4
      %p372 = pnand %p370, %p371
      %p373 = pneg %p372
      // Predicated region
      $region61: #{tpu_custom_call.1} parent=5 // pred_check
        _
      $region62: #{tpu_custom_call.1} parent=5 // pred_check_branch
        %375 = sbr.rel (%p372) target = $region64
      $region63: #{tpu_custom_call.1} parent=5 // pred_region
        %s376 = ssub.s32 %s21, 1
        // Predicated region
        $region65: #{tpu_custom_call.1} parent=63 // pred_check
          %p377 = pneg %p157
        $region66: #{tpu_custom_call.1} parent=63 // pred_check_branch
          %379 = sbr.rel (%p377) target = $region68
        $region67: #{tpu_custom_call.1} parent=63 // pred_region
          %381 = dma.done [#allocation4], 2048
        $region68: #{tpu_custom_call.1} parent=63 // pred_fallthru
          _
        // Predicated region
        $region69: #{tpu_custom_call.1} parent=63 // pred_check
          %p382 = pneg %p199
        $region70: #{tpu_custom_call.1} parent=63 // pred_check_branch
          %384 = sbr.rel (%p382) target = $region72
        $region71: #{tpu_custom_call.1} parent=63 // pred_region
          %386 = dma.done [#allocation6], 2048
        $region72: #{tpu_custom_call.1} parent=63 // pred_fallthru
          _
        %p387 = scmp.lt.s32.totalorder %s26, 2
        %s388 = scalar_select %p387, %s26, 2
        %s389 = smul.addr %s388, 8
        %s390 = scalar_lea.vmem %s0, %s389
        %p391 = pneg %p47
        %p392 = pneg %p44
        %p393 = scmp.lt.s32.totalorder %s26, 2
        %s394 = scalar_select %p393, %s26, 2
        %s395 = smul.addr %s394, 8
        %s396 = scalar_lea.vmem %s1, %s395
        %p397 = pneg %p73
        %p398 = pneg %p70
        %p399 = pneg %p94
        %p400 = pneg %p91
        %p401 = pneg %p115
        %p402 = pneg %p112
        %p403 = pneg %p136
        %p404 = pneg %p133
        %p405 = pneg %p157
        %p406 = pneg %p154
        %p407 = pneg %p178
        %p408 = pneg %p175
        %p409 = pneg %p199
        %p410 = pneg %p196
        %p411 = pneg %p220
        %p412 = pneg %p217
        %p413 = pneg %p241
        %p414 = pneg %p238
        %p415 = pneg %p262
        %p416 = pneg %p259
        %p417 = pneg %p288
        %p418 = pneg %p285
        %p419 = scmp.lt.s32.totalorder %s26, 2
        %s420 = scalar_select %p419, %s26, 2
        %s421 = smul.addr %s420, 8
        %s422 = scalar_lea.vmem %s11, %s421
        %p423 = scmp.lt.s32.totalorder %s26, 2
        %s424 = scalar_select %p423, %s26, 2
        %s425 = smul.addr %s424, 8
        %s426 = scalar_lea.vmem %s0, %s425
        %p427 = scmp.lt.s32.totalorder %s26, 2
        %s428 = scalar_select %p427, %s26, 2
        %s429 = smul.addr %s428, 8
        %s430 = scalar_lea.vmem %s1, %s429
        %p431 = scmp.lt.s32.totalorder %s26, 2
        %s432 = scalar_select %p431, %s26, 2
        %s433 = smul.addr %s432, 8
        %s434 = scalar_lea.vmem %s11, %s433
        %v435 = vld [vmem:[%s426] sm:$0xff]
        %v436 = vld [vmem:[%s430] sm:$0xff]
        %v437 = vld [vmem:[%s2] sm:$0xff]
        %v438 = vld [vmem:[%s2 + $0x8] sm:$0xf]
        %v439 = vld [vmem:[%s3] sm:$0xf]
        %vm440 = vcmask 31744
        %v442 = vsel %vm440, %v436, 0
        %vm444 = vcmask 1043456
        %v446 = vsel %vm444, %v439, 0
        %448 = vmatpush.msra.mxu0 0.0
        %449 = vmatpush.msra.mxu0 0.0
        %450 = vmatpush.msra.mxu0 0.0
        %451 = vmatpush.msra.mxu0 0.0
        %452 = vmatpush.msra.mxu0 0.0
        %453 = vmatpush.msra.mxu0 0.0
        %454 = vmatpush.msra.mxu0 0.0
        %455 = vmatpush.msra.mxu0 0.0
        %456 = vmatpush.msra.mxu0 0.0
        %457 = vmatpush.msra.mxu0 0.0
        %458 = vmatpush.msra.mxu0 0.0
        %459 = vmatpush.msra.mxu0 0.0
        %460 = vmatpush.msra.mxu0 0.0
        %461 = vmatpush.msra.mxu0 0.0
        %462 = vmatpush.msra.mxu0 0.0
        %463 = vmatpush.msra.mxu0 %v446
        %464 = vmatmul.f32.gmra.mxu0 %v442
        %v465 = vpop.f32.mrf.mxu0
        %v466 = vadd.f32 0.0, %v465
        %467 = vdwg.mxu0
        %vm468 = vcmask 97280
        %v470 = vsel %vm468, %v435, 0
        %v473 = vsel %vm444, %v438, 0
        %475 = vmatpush.msra.mxu0 0.0
        %476 = vmatpush.msra.mxu0 0.0
        %477 = vmatpush.msra.mxu0 0.0
        %478 = vmatpush.msra.mxu0 0.0
        %479 = vmatpush.msra.mxu0 0.0
        %480 = vmatpush.msra.mxu0 0.0
        %481 = vmatpush.msra.mxu0 0.0
        %482 = vmatpush.msra.mxu0 0.0
        %483 = vmatpush.msra.mxu0 0.0
        %484 = vmatpush.msra.mxu0 0.0
        %485 = vmatpush.msra.mxu0 0.0
        %486 = vmatpush.msra.mxu0 0.0
        %487 = vmatpush.msra.mxu0 0.0
        %488 = vmatpush.msra.mxu0 0.0
        %489 = vmatpush.msra.mxu0 %v473
        %490 = vmatpush.msra.mxu0 %v437
        %491 = vmatmul.f32.gmra.mxu0 %v470
        %v492 = vpop.f32.mrf.mxu0
        %v493 = vadd.f32 %v466, %v492
        %494 = vdwg.mxu0
        %v495 = vld [vmem:[%s4] sm:$0x1]
        %v497 = vperm.slane %v495, 0
        %v499 = vadd.f32 %v493, %v497
        %v500 = vmax.f32 %v499, 0.0
        %v501 = vld [vmem:[#allocation3] sm:$0xff]
        %v502 = vld [vmem:[#allocation3 + $0x8] sm:$0xff]
        %v503 = vld [vmem:[#allocation3 + $0x10] sm:$0xff]
        %v504 = vld [vmem:[#allocation3 + $0x18] sm:$0xff]
        %v505 = vld [vmem:[#allocation3 + $0x20] sm:$0xff]
        %v506 = vld [vmem:[#allocation3 + $0x28] sm:$0xff]
        %v507 = vld [vmem:[#allocation3 + $0x30] sm:$0xff]
        %v508 = vld [vmem:[#allocation3 + $0x38] sm:$0xff]
        %v509 = vld [vmem:[#allocation3 + $0x40] sm:$0xff]
        %v510 = vld [vmem:[#allocation3 + $0x48] sm:$0xff]
        %v511 = vld [vmem:[#allocation3 + $0x50] sm:$0xff]
        %v512 = vld [vmem:[#allocation3 + $0x58] sm:$0xff]
        %v513 = vld [vmem:[#allocation3 + $0x60] sm:$0xff]
        %v514 = vld [vmem:[#allocation3 + $0x68] sm:$0xff]
        %v515 = vld [vmem:[#allocation3 + $0x70] sm:$0xff]
        %v516 = vld [vmem:[#allocation3 + $0x78] sm:$0xff]
        %v517 = vld [vmem:[%s6] sm:$0x1]
        %v519 = vperm.slane %v517, 0
        %521 = vmatpush.msra.mxu0 %v516
        %522 = vmatpush.msra.mxu0 %v515
        %523 = vmatpush.msra.mxu0 %v514
        %524 = vmatpush.msra.mxu0 %v513
        %525 = vmatpush.msra.mxu0 %v512
        %526 = vmatpush.msra.mxu0 %v511
        %527 = vmatpush.msra.mxu0 %v510
        %528 = vmatpush.msra.mxu0 %v509
        %529 = vmatpush.msra.mxu0 %v508
        %530 = vmatpush.msra.mxu0 %v507
        %531 = vmatpush.msra.mxu0 %v506
        %532 = vmatpush.msra.mxu0 %v505
        %533 = vmatpush.msra.mxu0 %v504
        %534 = vmatpush.msra.mxu0 %v503
        %535 = vmatpush.msra.mxu0 %v502
        %536 = vmatpush.msra.mxu0 %v501
        %537 = vmatmul.f32.gmra.mxu0 %v500
        %v538 = vpop.f32.mrf.mxu0
        %v539 = vadd.f32 %v519, %v538
        %540 = vdwg.mxu0
        %v541 = vmax.f32 %v539, 0.0
        %v542 = vld [vmem:[#allocation5] sm:$0xff]
        %v543 = vld [vmem:[#allocation5 + $0x8] sm:$0xff]
        %v544 = vld [vmem:[#allocation5 + $0x10] sm:$0xff]
        %v545 = vld [vmem:[#allocation5 + $0x18] sm:$0xff]
        %v546 = vld [vmem:[#allocation5 + $0x20] sm:$0xff]
        %v547 = vld [vmem:[#allocation5 + $0x28] sm:$0xff]
        %v548 = vld [vmem:[#allocation5 + $0x30] sm:$0xff]
        %v549 = vld [vmem:[#allocation5 + $0x38] sm:$0xff]
        %v550 = vld [vmem:[#allocation5 + $0x40] sm:$0xff]
        %v551 = vld [vmem:[#allocation5 + $0x48] sm:$0xff]
        %v552 = vld [vmem:[#allocation5 + $0x50] sm:$0xff]
        %v553 = vld [vmem:[#allocation5 + $0x58] sm:$0xff]
        %v554 = vld [vmem:[#allocation5 + $0x60] sm:$0xff]
        %v555 = vld [vmem:[#allocation5 + $0x68] sm:$0xff]
        %v556 = vld [vmem:[#allocation5 + $0x70] sm:$0xff]
        %v557 = vld [vmem:[#allocation5 + $0x78] sm:$0xff]
        %v558 = vld [vmem:[%s8] sm:$0x1]
        %v560 = vperm.slane %v558, 0
        %562 = vmatpush.msra.mxu0 %v557
        %563 = vmatpush.msra.mxu0 %v556
        %564 = vmatpush.msra.mxu0 %v555
        %565 = vmatpush.msra.mxu0 %v554
        %566 = vmatpush.msra.mxu0 %v553
        %567 = vmatpush.msra.mxu0 %v552
        %568 = vmatpush.msra.mxu0 %v551
        %569 = vmatpush.msra.mxu0 %v550
        %570 = vmatpush.msra.mxu0 %v549
        %571 = vmatpush.msra.mxu0 %v548
        %572 = vmatpush.msra.mxu0 %v547
        %573 = vmatpush.msra.mxu0 %v546
        %574 = vmatpush.msra.mxu0 %v545
        %575 = vmatpush.msra.mxu0 %v544
        %576 = vmatpush.msra.mxu0 %v543
        %577 = vmatpush.msra.mxu0 %v542
        %578 = vmatmul.f32.gmra.mxu0 %v541
        %v579 = vpop.f32.mrf.mxu0
        %v580 = vadd.f32 %v560, %v579
        %581 = vdwg.mxu0
        %v582 = vmax.f32 %v580, 0.0
        %v583 = vld [vmem:[%s9] sm:$0x1]
        %v585 = vperm.slane %v583, 0
        %v587 = vmul.f32 %v582, %v585
        %588 = vadd.xlane.f32.xlu0 %v587
        %v589 = vpop.xlane.xlu0 %588
        %v590 = vld [vmem:[#allocation2] sm:$0x1]
        %v592 = vperm.slane %v590, 0
        %v594 = vadd.f32 %v589, %v592
        %vm595 = vcmask 7168
        %596 = vst.msk [vmem:[%s434] sm:$0xff] %vm595, %v594
        %p597 = scmp.lt.s32.totalorder %s26, 2
        %s598 = scalar_select %p597, %s26, 2
        %s599 = smul.addr %s598, 8
        %s600 = scalar_lea.vmem %s11, %s599
        // Predicated region
        $region73: #{tpu_custom_call.1} parent=63 // pred_check
          %p601 = pneg %p285
        $region74: #{tpu_custom_call.1} parent=63 // pred_check_branch
          %603 = sbr.rel (%p601) target = $region76
        $region75: #{tpu_custom_call.1} parent=63 // pred_region
          _
        $region76: #{tpu_custom_call.1} parent=63 // pred_fallthru
          _
      $region64: #{tpu_custom_call.1} parent=5 // pred_fallthru
        _
      %p604 = scmp.le.s32.totalorder 2, %s21
      // Predicated region
      $region77: #{tpu_custom_call.1} parent=5 // pred_check
        %p605 = pneg %p604
      $region78: #{tpu_custom_call.1} parent=5 // pred_check_branch
        %607 = sbr.rel (%p605) target = $region80
      $region79: #{tpu_custom_call.1} parent=5 // pred_region
        %s608 = ssub.s32 %s21, 2
        // Predicated region
        $region81: #{tpu_custom_call.1} parent=79 // pred_check
          %p609 = pneg %p291
        $region82: #{tpu_custom_call.1} parent=79 // pred_check_branch
          %611 = sbr.rel (%p609) target = $region84
        $region83: #{tpu_custom_call.1} parent=79 // pred_region
          %p612 = scmp.lt.s32.totalorder %s27, 2
          %s613 = scalar_select %p612, %s27, 2
          %s614 = smul.addr %s613, 8
          %s615 = scalar_lea.vmem %s11, %s614
        $region84: #{tpu_custom_call.1} parent=79 // pred_fallthru
          _
      $region80: #{tpu_custom_call.1} parent=5 // pred_fallthru
        _
    $region6: #{tpu_custom_call.1} parent=1 // loop_footer
      %s25 = sadd.s32 1, %s21
    $region7: #{tpu_custom_call.1} parent=1 // loop_footer_branch
      %20 = sbr.rel target = $region3
    $region8: #{tpu_custom_call.1} parent=1 // loop_exit
      _
    %616 = vsyncpa [#allocation4], 1
    %s617 = scalar_lea.sflag [#allocation4], 1
    %618 = vsyncpa %s617, 1
    %619 = vsyncpa [#allocation6], 1

</llo_original>
